<compile_context>
chip_gen: v5e
topology: v5e:2x2
jax: 0.10.0
libtpu: 0.0.40
codegen_flags: <defaults>
</compile_context>

<pallas_src>
import math
import functools

import jax
import jax.numpy as jnp
from jax.experimental import pallas as pl
from jax.experimental.pallas import tpu as pltpu

# Above the 16 MiB (v5e) / 32 MiB (v6e, v7x) scoped-VMEM defaults, below v7x's 64 MiB physical.
_VMEM_LIMIT_BYTES = 48 * 1024 * 1024


# ----------------------------- Linear projection kernel (M-tiled) -----------------------------
def _linear_kernel(x_ref, w_ref, b_ref, o_ref):
    # x: [tm, K], w: [K, N] (resident, bf16/f32), b: [1, N] f32  ->  o: [tm, N]
    # Cast activations to the weight dtype so the MXU runs at native (bf16) rate;
    # accumulate in f32 and cast once at the store.
    x = x_ref[...].astype(w_ref.dtype)
    acc = jnp.dot(x, w_ref[...], preferred_element_type=jnp.float32)
    o_ref[...] = (acc + b_ref[...]).astype(o_ref.dtype)


def linear(x, w, b, *, out_dtype, tile_m=512):
    """y = x @ w + b (w stored [in, out] == PyTorch weight.T), tiled over rows."""
    M, K = x.shape
    N = w.shape[1]
    tm = M if M <= tile_m else tile_m  # tm == M, or a multiple of 8
    return pl.pallas_call(
        _linear_kernel,
        out_shape=jax.ShapeDtypeStruct((M, N), out_dtype),
        grid=(pl.cdiv(M, tm),),
        in_specs=[
            pl.BlockSpec((tm, K), lambda i: (i, 0)),
            # Constant index_map -> single-buffer the resident weight/bias
            # (double-buffering them is pure VMEM waste).
            pl.BlockSpec((K, N), lambda i: (0, 0), pipeline_mode=pl.Buffered(1)),
            pl.BlockSpec((1, N), lambda i: (0, 0), pipeline_mode=pl.Buffered(1)),
        ],
        out_specs=pl.BlockSpec((tm, N), lambda i: (i, 0)),
        compiler_params=pltpu.CompilerParams(
            dimension_semantics=("parallel",),
            vmem_limit_bytes=_VMEM_LIMIT_BYTES,
        ),
    )(x, w, b.reshape(1, N))


# ----------------------------- Per-(batch, q-tile) all-heads attention kernel -----------------------------
def _attn_kernel(*refs, nH, dh, has_mask):
    if has_mask:
        q_ref, kv_ref, mask_ref, o_ref = refs
    else:
        q_ref, kv_ref, o_ref = refs
        mask_ref = None

    tq = q_ref.shape[0]
    H = nH * dh

    q = q_ref[...]                     # [tq, nH, dh]  (bf16 or f32)
    # Slice the Ref along the untiled K/V axis BEFORE loading (half the live working set).
    k = kv_ref[:, 0]                   # [Sk, nH, dh]
    v = kv_ref[:, 1]                   # [Sk, nH, dh]

    # All heads of one (batch, q-tile) in one batched MXU contraction over dh.
    # The 1/sqrt(dh) scale is already folded into wq/bq at parameter-prep time.
    scores = jnp.einsum("qhd,khd->hqk", q, k,
                        preferred_element_type=jnp.float32)        # [nH, tq, Sk] f32
    if mask_ref is not None:
        # mask block is [tq|1, Sk]; broadcasts over heads (and over q if its Sq axis is 1).
        scores = scores + mask_ref[...]

    scores = scores - jnp.max(scores, axis=-1, keepdims=True)
    p = jnp.exp(scores)
    p = p * pl.reciprocal(jnp.sum(p, axis=-1, keepdims=True), approx=True)
    # TODO(synk): attention-prob dropout omitted (module evaluated in eval/inference mode).

    ctx = jnp.einsum("hqk,khd->qhd", p.astype(v.dtype), v,
                     preferred_element_type=jnp.float32)           # [tq, nH, dh] f32
    # Lane-dense store: merge heads so the output block is [tq, nH*dh].
    o_ref[...] = ctx.reshape(tq, H).astype(o_ref.dtype)


def fused_attention(q, kv, mask, *, out_dtype, tile_q=256):
    """q: [B, Sq, nH, dh]; kv: [B, Sk, 2, nH, dh]; mask: None or [Bm, Sq_m, Sk] (additive)."""
    B, Sq, nH, dh = q.shape
    Sk = kv.shape[1]
    H = nH * dh
    has_mask = mask is not None
    tq = Sq if Sq <= tile_q else tile_q   # tq == Sq, or a multiple of 8

    in_specs = [
        pl.BlockSpec((None, tq, nH, dh), lambda b, qi: (b, qi, 0, 0)),
        # K/V block index is constant across the q-tile axis -> fetched once per batch.
        pl.BlockSpec((None, Sk, 2, nH, dh), lambda b, qi: (b, 0, 0, 0, 0)),
    ]
    args = [q, kv]
    if has_mask:
        Bm, Sqm, _ = mask.shape
        bsel = (lambda b: 0) if Bm == 1 else (lambda b: b)
        if Sqm == 1:
            in_specs.append(pl.BlockSpec((None, 1, Sk), lambda b, qi: (bsel(b), 0, 0)))
        else:
            in_specs.append(pl.BlockSpec((None, tq, Sk), lambda b, qi: (bsel(b), qi, 0)))
        args.append(mask)

    kernel = functools.partial(_attn_kernel, nH=nH, dh=dh, has_mask=has_mask)
    return pl.pallas_call(
        kernel,
        out_shape=jax.ShapeDtypeStruct((B, Sq, H), out_dtype),
        grid=(B, pl.cdiv(Sq, tq)),
        in_specs=in_specs,
        out_specs=pl.BlockSpec((None, tq, H), lambda b, qi: (b, qi, 0)),  # lane-dense block
        compiler_params=pltpu.CompilerParams(
            dimension_semantics=("parallel", "parallel"),
            vmem_limit_bytes=_VMEM_LIMIT_BYTES,
        ),
    )(*args)


# ----------------------------- BertAttention forward -----------------------------
def prepare_params(params, num_attention_heads, *, param_dtype=jnp.bfloat16):
    """ONE-TIME parameter prep (call at init, not per forward):
       * fold 1/sqrt(dh) into the query projection,
       * fuse the K/V projections into a single [Hm, 2H] weight (context read once),
       * cast weights to param_dtype (bf16 -> native MXU rate, half the resident VMEM).
       Biases stay f32 (added after the f32 MXU accumulation; footprint is negligible)."""
    H = params["wq"].shape[1]
    dh = H // num_attention_heads
    scale = 1.0 / math.sqrt(dh)
    return {
        "wq": (params["wq"] * scale).astype(param_dtype),
        "bq": (params["bq"] * scale).astype(jnp.float32),
        "wkv": jnp.concatenate([params["wk"], params["wv"]], axis=1).astype(param_dtype),
        "bkv": jnp.concatenate([params["bk"], params["bv"]], axis=0).astype(jnp.float32),
    }


def bert_attention(hidden_states, context, prep, num_attention_heads,
                   attention_mask=None, *, tile_q=256, tile_m=512):
    B, Sq, Ht = hidden_states.shape
    _, Sk, Hm = context.shape
    nH = num_attention_heads
    dh = Ht // nH
    H = nH * dh
    act_dtype = prep["wq"].dtype   # q/kv activations stored at the weight precision (bf16 default)

    q = linear(hidden_states.reshape(B * Sq, Ht), prep["wq"], prep["bq"],
               out_dtype=act_dtype, tile_m=tile_m)                            # [B*Sq, H]
    kv = linear(context.reshape(B * Sk, Hm), prep["wkv"], prep["bkv"],
                out_dtype=act_dtype, tile_m=tile_m)                           # [B*Sk, 2H]

    # Head split is a free contiguous reshape -- no XLA transposes anywhere.
    q = q.reshape(B, Sq, nH, dh)
    kv = kv.reshape(B, Sk, 2, nH, dh)

    mask = None
    if attention_mask is not None:
        m = attention_mask.astype(jnp.float32)
        # Standard BERT broadcastable mask [B or 1, 1, Sq or 1, Sk]: drop the head axis and
        # broadcast in-kernel (over heads, and over query positions if the Sq axis is 1).
        assert m.ndim == 4 and m.shape[1] == 1 and m.shape[-1] == Sk
        mask = m.reshape(m.shape[0], m.shape[2], m.shape[3])

    return fused_attention(q, kv, mask, out_dtype=hidden_states.dtype,
                           tile_q=tile_q)                                     # [B, Sq, H]


# ----------------------------- Reference (pure JAX) for sanity check -----------------------------
def bert_attention_ref(hidden_states, context, params, num_attention_heads, attention_mask=None):
    B, Sq, Ht = hidden_states.shape
    _, Sk, Hm = context.shape
    dh = Ht // num_attention_heads
    nH = num_attention_heads
    q = hidden_states @ params["wq"] + params["bq"]
    k = context @ params["wk"] + params["bk"]
    v = context @ params["wv"] + params["bv"]
    q = q.reshape(B, Sq, nH, dh).transpose(0, 2, 1, 3)
    k = k.reshape(B, Sk, nH, dh).transpose(0, 2, 1, 3)
    v = v.reshape(B, Sk, nH, dh).transpose(0, 2, 1, 3)
    scores = jnp.einsum("bhqd,bhkd->bhqk", q, k) / math.sqrt(dh)
    if attention_mask is not None:
        scores = scores + attention_mask
    probs = jax.nn.softmax(scores, axis=-1)
    ctx = jnp.einsum("bhqk,bhkd->bhqd", probs, v)
    return ctx.transpose(0, 2, 1, 3).reshape(B, Sq, nH * dh)


if __name__ == "__main__":
    # Small, BertAttention-consistent shapes.
    B = 2
    Sq = 8            # text sequence length
    Sk = 16           # molecule (context) sequence length
    text_hidden = 32
    molecule_hidden = 24
    num_attention_heads = 4    # 32 % 4 == 0 -> head_size = 8

    key = jax.random.PRNGKey(0)
    k_hs, k_ctx, k_wq, k_bq, k_wk, k_bk, k_wv, k_bv, k_mask = jax.random.split(key, 9)

    hidden_states = jax.random.normal(k_hs, (B, Sq, text_hidden), jnp.float32)
    context = jax.random.normal(k_ctx, (B, Sk, molecule_hidden), jnp.float32)
    # Additive attention mask (BERT-style broadcastable [B, 1, Sq, Sk]).
    attention_mask = jax.random.normal(k_mask, (B, 1, Sq, Sk), jnp.float32) * 0.1

    # Deterministic parameter init; weights stored as [in, out] (== PyTorch weight.T).
    params = {
        "wq": jax.random.normal(k_wq, (text_hidden, text_hidden), jnp.float32) * 0.05,
        "bq": jax.random.normal(k_bq, (text_hidden,), jnp.float32) * 0.05,
        "wk": jax.random.normal(k_wk, (molecule_hidden, text_hidden), jnp.float32) * 0.05,
        "bk": jax.random.normal(k_bk, (text_hidden,), jnp.float32) * 0.05,
        "wv": jax.random.normal(k_wv, (molecule_hidden, text_hidden), jnp.float32) * 0.05,
        "bv": jax.random.normal(k_bv, (text_hidden,), jnp.float32) * 0.05,
    }

    ref = bert_attention_ref(hidden_states, context, params, num_attention_heads, attention_mask)
    ref_nm = bert_attention_ref(hidden_states, context, params, num_attention_heads, None)

    # Default bf16 data path (native MXU rate, half the q/kv HBM bytes). Prep is hoisted
    # out of the forward call -- one-time init cost.
    prep_bf16 = prepare_params(params, num_attention_heads)           # bf16 weights
    out = bert_attention(hidden_states, context, prep_bf16, num_attention_heads, attention_mask)
    out = jax.block_until_ready(out)
    assert out.shape == (B, Sq, text_hidden)
    assert jnp.allclose(out, ref, atol=2e-2, rtol=2e-2)                # bf16 matmul tolerance

    # No-mask kernel variant (compiled without a mask input), bf16 path.
    out_nm = bert_attention(hidden_states, context, prep_bf16, num_attention_heads, None)
    out_nm = jax.block_until_ready(out_nm)
    assert jnp.allclose(out_nm, ref_nm, atol=2e-2, rtol=2e-2)

    # Full-f32 path for a tight numerical check (tolerance covers the EUP approx-reciprocal).
    prep_f32 = prepare_params(params, num_attention_heads, param_dtype=jnp.float32)
    out_f32 = bert_attention(hidden_states, context, prep_f32, num_attention_heads, attention_mask)
    out_f32 = jax.block_until_ready(out_f32)
    assert jnp.allclose(out_f32, ref, atol=2e-3, rtol=2e-3)

    print("KERNEL_OK")
</pallas_src>

<mosaic_0001>
module attributes {stable_mosaic.version = 11 : i64} {
  func.func @_linear_kernel(%arg0: i32, %arg1: memref<16x32xf32, #tpu.memory_space<vmem>>, %arg2: memref<32x32xbf16, #tpu.memory_space<vmem>>, %arg3: memref<1x32xf32, #tpu.memory_space<vmem>>, %arg4: memref<16x32xbf16, #tpu.memory_space<vmem>>) attributes {dimension_semantics = [#tpu.dimension_semantics<parallel>], iteration_bounds = array<i64: 1>, scalar_prefetch = 0 : i64, scratch_operands = 0 : i64, tpu.core_type = #tpu.core_type<tc>, window_params = [{transform_indices = @transform_0, window_bounds = array<i64: 16, 32>}, {pipeline_mode = #tpu.pipeline_mode<synchronous>, transform_indices = @transform_1, window_bounds = array<i64: 32, 32>}, {pipeline_mode = #tpu.pipeline_mode<synchronous>, transform_indices = @transform_2, window_bounds = array<i64: 1, 32>}, {transform_indices = @transform_3, window_bounds = array<i64: 16, 32>}]} {
    %c0 = arith.constant 0 : index
    %c0_0 = arith.constant 0 : index
    %0 = vector.load %arg1[%c0, %c0_0] : memref<16x32xf32, #tpu.memory_space<vmem>>, vector<16x32xf32>
    %1 = arith.truncf %0 : vector<16x32xf32> to vector<16x32xbf16>
    %c0_1 = arith.constant 0 : index
    %c0_2 = arith.constant 0 : index
    %2 = vector.load %arg2[%c0_1, %c0_2] : memref<32x32xbf16, #tpu.memory_space<vmem>>, vector<32x32xbf16>
    %cst = arith.constant dense<0.000000e+00> : vector<16x32xf32>
    %3 = tpu.matmul %1, %2, %cst {dimension_numbers = #tpu.dot_dimension_numbers<[1], [0], [0], [1], [0, 0, 1, 1], [], []>} : vector<16x32xbf16>, vector<32x32xbf16>, vector<16x32xf32> -> vector<16x32xf32>
    %c0_3 = arith.constant 0 : index
    %c0_4 = arith.constant 0 : index
    %4 = vector.load %arg3[%c0_3, %c0_4] : memref<1x32xf32, #tpu.memory_space<vmem>>, vector<1x32xf32>
    %5 = vector.broadcast %4 : vector<1x32xf32> to vector<16x32xf32>
    %6 = arith.addf %3, %5 : vector<16x32xf32>
    %7 = arith.truncf %6 : vector<16x32xf32> to vector<16x32xbf16>
    %c0_5 = arith.constant 0 : index
    %c0_6 = arith.constant 0 : index
    %8 = vector.load %arg4[%c0_5, %c0_6] : memref<16x32xbf16, #tpu.memory_space<vmem>>, vector<16x32xbf16>
    tpu.vector_store %arg4[%c0_5, %c0_6], %7 {strides = array<i32>} : memref<16x32xbf16, #tpu.memory_space<vmem>>, vector<16x32xbf16>,
    return
  }
  func.func @transform_0(%arg0: i32) -> (i32, i32) {
    %c0_i32 = arith.constant 0 : i32
    %c0_i32_0 = arith.constant 0 : i32
    return %arg0, %c0_i32 : i32, i32
  }
  func.func @transform_1(%arg0: i32) -> (i32, i32) {
    %c0_i32 = arith.constant 0 : i32
    %c0_i32_0 = arith.constant 0 : i32
    %c0_i32_1 = arith.constant 0 : i32
    return %c0_i32, %c0_i32_0 : i32, i32
  }
  func.func @transform_2(%arg0: i32) -> (i32, i32) {
    %c0_i32 = arith.constant 0 : i32
    %c0_i32_0 = arith.constant 0 : i32
    %c0_i32_1 = arith.constant 0 : i32
    return %c0_i32, %c0_i32_0 : i32, i32
  }
  func.func @transform_3(%arg0: i32) -> (i32, i32) {
    %c0_i32 = arith.constant 0 : i32
    %c0_i32_0 = arith.constant 0 : i32
    return %arg0, %c0_i32 : i32, i32
  }
}

</mosaic_0001>

<llo_original>
// kernel: tpu_custom_call.1
$region0: #{tpu_custom_call.1}
  #allocation0 [shape = 'u32[]', space=smem, size = 0x4, offset = 0x4, fixed_abs, tag = 'smem constant byte address 0x4 - core index']
  #allocation1 [shape = 'u32[72,128]{1,0:T(1,128)}', space=vmem, size = 0x9000, scoped, tag = 'internal scratch']
  %s0 = inlined_call_operand.hbm [shape: f32[16,32], index: 0, kind: input, shape index: {}]
  %s1 = inlined_call_operand.hbm [shape: bf16[32,32], index: 1, kind: input, shape index: {}]
  %s2 = inlined_call_operand.vmem [shape: f32[1,32], index: 2, kind: input, shape index: {}]
  %s3 = inlined_call_operand.hbm [shape: bf16[16,32], index: 3, kind: output, shape index: {}]
  %s4 = sld [smem:[#allocation0]]
  $region30: #{tpu_custom_call.1} parent=0
    _
  %s6 = ssub.s32 1, %s4
  %s7 = scalar_select 0, %s6, %s4
  $region1: #{tpu_custom_call.1} parent=0
    #allocation2 [shape = 'u8[8192]{0}', space=vmem, size = 0x2000, scoped, tag = 'input window, operand 0, single buffered']
    #allocation3 [shape = 's32[1]{0}', space=sflag, size = 0x4, scoped, tag = 'scoped memory for tpu_custom_call.1']
    #allocation4 [shape = 's32[1]{0}', space=sflag, size = 0x4, scoped, tag = 'scoped memory for tpu_custom_call.1']
    #allocation5 [shape = 'u8[8192]{0}', space=vmem, size = 0x2000, scoped, tag = 'input window, operand 1, single buffered']
    #allocation6 [shape = 's32[1]{0}', space=sflag, size = 0x4, scoped, tag = 'scoped memory for tpu_custom_call.1']
    #allocation7 [shape = 'u8[4096]{0}', space=vmem, size = 0x1000, scoped, tag = 'output window, operand 0, single buffered']
    %8 = vsyncpa [#allocation3], 0
    %9 = vsyncpa [#allocation6], 0
    %10 = vsyncpa [#allocation4], 0
    // Predicated region
    $region2: #{tpu_custom_call.1} parent=1 // pred_check
      _
    $region3: #{tpu_custom_call.1} parent=1 // pred_check_branch
      %12 = sbr.rel (0) target = $region5
    $region4: #{tpu_custom_call.1} parent=1 // pred_region
      %14 = vsyncadd [#allocation3], 0
      %s15 = sshll.u32 %s0, 4
      %s16 = int_to_ptr.hbm [resolvable:$true] %s15
      %s17 = sshll.u32 [#allocation2], 4
      %s18 = int_to_ptr.vmem [resolvable:$true] %s17
      %23 = dma.hbm_to_vmem [thread:$0]  %s16, 256, %s18, [#allocation3], 128, 128, 8
    $region5: #{tpu_custom_call.1} parent=1 // pred_fallthru
      _
    // Predicated region
    $region6: #{tpu_custom_call.1} parent=1 // pred_check
      _
    $region7: #{tpu_custom_call.1} parent=1 // pred_check_branch
      %25 = sbr.rel (0) target = $region9
    $region8: #{tpu_custom_call.1} parent=1 // pred_region
      %27 = vsyncadd [#allocation6], 0
      %s28 = sshll.u32 %s1, 4
      %s29 = int_to_ptr.hbm [resolvable:$true] %s28
      %s30 = sshll.u32 [#allocation5], 4
      %s31 = int_to_ptr.vmem [resolvable:$true] %s30
      %36 = dma.hbm_to_vmem [thread:$0]  %s29, 256, %s31, [#allocation6], 64, 64, 4
    $region9: #{tpu_custom_call.1} parent=1 // pred_fallthru
      _
    // Predicated region
    $region10: #{tpu_custom_call.1} parent=1 // pred_check
      _
    $region11: #{tpu_custom_call.1} parent=1 // pred_check_branch
      %38 = sbr.rel (0) target = $region13
    $region12: #{tpu_custom_call.1} parent=1 // pred_region
      _
    $region13: #{tpu_custom_call.1} parent=1 // pred_fallthru
      _
    // Predicated region
    $region14: #{tpu_custom_call.1} parent=1 // pred_check
      _
    $region15: #{tpu_custom_call.1} parent=1 // pred_check_branch
      %40 = sbr.rel (0) target = $region17
    $region16: #{tpu_custom_call.1} parent=1 // pred_region
      %42 = dma.done [#allocation3], 256
    $region17: #{tpu_custom_call.1} parent=1 // pred_fallthru
      _
    // Predicated region
    $region18: #{tpu_custom_call.1} parent=1 // pred_check
      _
    $region19: #{tpu_custom_call.1} parent=1 // pred_check_branch
      %44 = sbr.rel (0) target = $region21
    $region20: #{tpu_custom_call.1} parent=1 // pred_region
      %46 = dma.done [#allocation6], 256
    $region21: #{tpu_custom_call.1} parent=1 // pred_fallthru
      _
    %v48 = vld [vmem:[#allocation2] sm:$0xff]
    %v49 = vld [vmem:[#allocation2 + $0x8] sm:$0xff]
    %v50 = vpack.c.bf16 %v49, %v48
    %v51 = vld [vmem:[#allocation5] sm:$0xf]
    %v52 = vld [vmem:[#allocation5 + $0x4] sm:$0xf]
    %v53 = vld [vmem:[#allocation5 + $0x8] sm:$0xf]
    %v54 = vld [vmem:[#allocation5 + $0xc] sm:$0xf]
    %v55 = vld [vmem:[%s2] sm:$0x1]
    %v57 = vperm.slane %v55, 0
    %v63 = vunpack.c.l.b16 %v51
    %v64 = vunpack.c.l.b16 %v52
    %v65 = vunpack.c.l.b16 %v53
    %v66 = vunpack.c.l.b16 %v54
    %v67 = vpack.c.b16 %v64, %v63
    %v68 = vpack.c.b16 %v66, %v65
    %vm71 = vcmask 261120
    %v73 = vsel %vm71, %v50, 0
    %75 = vmatpush.bf16.msra.mxu0 0
    %76 = vmatpush.bf16.msra.mxu0 0
    %77 = vmatpush.bf16.msra.mxu0 0
    %78 = vmatpush.bf16.msra.mxu0 0
    %79 = vmatpush.bf16.msra.mxu0 0
    %80 = vmatpush.bf16.msra.mxu0 0
    %81 = vmatpush.bf16.msra.mxu0 %v68
    %82 = vmatpush.bf16.msra.mxu0 %v67
    %83 = vmatmul.bf16.gmra.mxu0 %v73
    %v84 = vpop.f32.mrf.mxu0
    %v85 = vadd.f32 %v57, %v84
    %v86 = vpop.f32.mrf.mxu0
    %v87 = vadd.f32 %v57, %v86
    %88 = vdwg.mxu0
    %v89 = vpack.c.bf16 %v85, %v85
    %v90 = vpack.c.bf16 %v87, %v87
    %vm91 = vcmask 257024
    %92 = vst.msk [vmem:[#allocation7] sm:$0xf] %vm91, %v89
    %93 = vst.msk [vmem:[#allocation7 + $0x4] sm:$0xf] %vm91, %v90
    // Predicated region
    $region22: #{tpu_custom_call.1} parent=1 // pred_check
      _
    $region23: #{tpu_custom_call.1} parent=1 // pred_check_branch
      %95 = sbr.rel (0) target = $region25
    $region24: #{tpu_custom_call.1} parent=1 // pred_region
      %97 = vsyncadd [#allocation4], 0
      %s98 = sshll.u32 [#allocation7], 4
      %s99 = int_to_ptr.vmem [resolvable:$true] %s98
      %s100 = sshll.u32 %s3, 4
      %s101 = int_to_ptr.hbm [resolvable:$true] %s100
      %106 = dma.vmem_to_hbm [thread:$0]  %s99, 128, %s101, [#allocation4], 64, 64, 4
    $region25: #{tpu_custom_call.1} parent=1 // pred_fallthru
      _
    // Predicated region
    $region26: #{tpu_custom_call.1} parent=1 // pred_check
      _
    $region27: #{tpu_custom_call.1} parent=1 // pred_check_branch
      %108 = sbr.rel (0) target = $region29
    $region28: #{tpu_custom_call.1} parent=1 // pred_region
      %110 = dma.done [#allocation4], 128
    $region29: #{tpu_custom_call.1} parent=1 // pred_fallthru
      _
    %111 = vsyncpa [#allocation3], 1
    %112 = vsyncpa [#allocation6], 1
    %113 = vsyncpa [#allocation4], 1

</llo_original>
